<compile_context>
chip_gen: v5e
topology: v5e:2x2
jax: 0.10.0
libtpu: 0.0.40
codegen_flags: <defaults>
</compile_context>

<pallas_src>
import jax
import jax.numpy as jnp
from jax.experimental import pallas as pl
from jax.experimental.pallas import tpu as pltpu

_LANES = 128          # vreg lane width
_SUBLANES = 8         # f32 sublane multiple
_MAX_BATCH_TILE = 256 # batch tile cap (tiny features -> far below VMEM limits)


# ---------------------------------------------------------------------------
# Kernels
# ---------------------------------------------------------------------------
def _combiner_kernel_zu(z_ref, u_ref, h_ref,
                        w1z_ref, w1u_ref, b1_ref,
                        wh_ref, bh_ref,
                        out_ref):
    # z @ W1_z + u @ W1_u + b1  (replaces concat([z,u]) @ W1)
    pre = (jnp.dot(z_ref[...], w1z_ref[...], preferred_element_type=jnp.float32)
           + jnp.dot(u_ref[...], w1u_ref[...], preferred_element_type=jnp.float32)
           + b1_ref[...].astype(jnp.float32))
    # 0.5 factor of h_combined is folded into wh_ref at param-fusion time.
    s = jnp.tanh(pre) + h_ref[...].astype(jnp.float32)          # EUP tanh + VPU add
    # single fused head matmul -> [TB, 128] lane-dense output (loc | scale | 0-pad)
    out_ref[...] = (jnp.dot(s.astype(wh_ref.dtype), wh_ref[...],
                            preferred_element_type=jnp.float32)
                    + bh_ref[...].astype(jnp.float32)).astype(out_ref.dtype)


def _combiner_kernel_z(z_ref, h_ref,
                       w1z_ref, b1_ref,
                       wh_ref, bh_ref,
                       out_ref):
    # u_t_1 is None path (module built with u_dim == 0)
    pre = (jnp.dot(z_ref[...], w1z_ref[...], preferred_element_type=jnp.float32)
           + b1_ref[...].astype(jnp.float32))
    s = jnp.tanh(pre) + h_ref[...].astype(jnp.float32)
    out_ref[...] = (jnp.dot(s.astype(wh_ref.dtype), wh_ref[...],
                            preferred_element_type=jnp.float32)
                    + bh_ref[...].astype(jnp.float32)).astype(out_ref.dtype)


# ---------------------------------------------------------------------------
# One-time parameter fusion (do NOT redo this per time step)
# ---------------------------------------------------------------------------
def fuse_combiner_params(params, z_dim, u_dim, *, storage_dtype=jnp.float32):
    """Split W1 into z/u parts; fuse (Wloc|Wscale) into one head, fold in the 0.5
    of h_combined, and zero-pad the head output dim to a multiple of 128 lanes.
    storage_dtype=jnp.bfloat16 halves weight DMA bytes on v6e/v7x (accumulation
    stays f32 either way)."""
    W1, b1 = params["W1"], params["b1"]
    # 0.5 * (tanh + h) @ W == (tanh + h) @ (0.5 * W)   (exact: scaling by 2^-1)
    Whead = 0.5 * jnp.concatenate([params["Wloc"], params["Wscale"]], axis=1)  # [rnn, 2*z]
    bhead = jnp.concatenate([params["bloc"], params["bscale"]])                # [2*z]
    out_f = Whead.shape[1]
    out_f_pad = max(_LANES, -(-out_f // _LANES) * _LANES)
    Whead = jnp.pad(Whead, ((0, 0), (0, out_f_pad - out_f)))
    bhead = jnp.pad(bhead, (0, out_f_pad - out_f))
    return dict(
        W1_z=W1[:z_dim].astype(storage_dtype),
        W1_u=(W1[z_dim:z_dim + u_dim].astype(storage_dtype) if u_dim > 0 else None),
        b1=b1.reshape(1, -1).astype(jnp.float32),
        Whead=Whead.astype(storage_dtype),
        bhead=bhead.reshape(1, -1).astype(jnp.float32),
        out_features=out_f,   # = 2 * z_dim (static python int)
    )


# ---------------------------------------------------------------------------
# Forward
# ---------------------------------------------------------------------------
def combiner_forward(z_t_1, u_t_1, h_rnn, fused):
    B, z_dim = z_t_1.shape
    rnn_dim = h_rnn.shape[1]
    out_f = fused["out_features"]
    out_f_pad = fused["Whead"].shape[1]

    # Batch tile: multiple of 8 sublanes, capped; pad B up so tiles divide evenly.
    B_pad = -(-B // _SUBLANES) * _SUBLANES
    if B_pad > _MAX_BATCH_TILE:
        tb = _MAX_BATCH_TILE
        B_pad = -(-B // tb) * tb
    else:
        tb = B_pad

    def pad_b(x):
        return x if x.shape[0] == B_pad else jnp.pad(x, ((0, B_pad - x.shape[0]), (0, 0)))

    z = pad_b(z_t_1)
    h = pad_b(h_rnn)
    has_u = (u_t_1 is not None) and (fused["W1_u"] is not None)
    grid = (B_pad // tb,)

    def act_spec(f):
        return pl.BlockSpec((tb, f), lambda i: (i, 0))

    def resident_spec(a):
        # same block for every grid step -> weights stay resident in VMEM
        return pl.BlockSpec(a.shape, lambda i: (0, 0))

    if has_u:
        u = pad_b(u_t_1)
        u_dim = u.shape[1]
        kernel = _combiner_kernel_zu
        inputs = (z, u, h, fused["W1_z"], fused["W1_u"], fused["b1"],
                  fused["Whead"], fused["bhead"])
        in_specs = [act_spec(z_dim), act_spec(u_dim), act_spec(rnn_dim),
                    resident_spec(fused["W1_z"]), resident_spec(fused["W1_u"]),
                    resident_spec(fused["b1"]), resident_spec(fused["Whead"]),
                    resident_spec(fused["bhead"])]
    else:
        kernel = _combiner_kernel_z
        inputs = (z, h, fused["W1_z"], fused["b1"],
                  fused["Whead"], fused["bhead"])
        in_specs = [act_spec(z_dim), act_spec(rnn_dim),
                    resident_spec(fused["W1_z"]), resident_spec(fused["b1"]),
                    resident_spec(fused["Whead"]), resident_spec(fused["bhead"])]

    out = pl.pallas_call(
        kernel,
        out_shape=jax.ShapeDtypeStruct((B_pad, out_f_pad), jnp.float32),
        grid=grid,
        in_specs=in_specs,
        out_specs=pl.BlockSpec((tb, out_f_pad), lambda i: (i, 0)),
        compiler_params=pltpu.CompilerParams(
            dimension_semantics=("parallel",),          # uses both TCs on v7x
            vmem_limit_bytes=32 * 1024 * 1024),         # fits v7x 64 MiB VMEM easily
    )(*inputs)

    loc = out[:B, : out_f // 2]
    scale = out[:B, out_f // 2: out_f]
    return loc, scale


# ---------------------------------------------------------------------------
# Synthetic init + pure-JAX reference
# ---------------------------------------------------------------------------
def init_combiner_params(key, z_dim, u_dim, rnn_dim):
    """Mimics nn.Linear's U(-1/sqrt(fan_in), 1/sqrt(fan_in)); weights stored [in, out]."""
    ks = jax.random.split(key, 6)
    zu_dim = z_dim + u_dim

    def lin(kw, kb, fan_in, fan_out):
        bound = 1.0 / jnp.sqrt(fan_in)
        W = jax.random.uniform(kw, (fan_in, fan_out), jnp.float32, -bound, bound)
        b = jax.random.uniform(kb, (fan_out,), jnp.float32, -bound, bound)
        return W, b

    W1, b1 = lin(ks[0], ks[1], zu_dim, rnn_dim)
    Wloc, bloc = lin(ks[2], ks[3], rnn_dim, z_dim)
    Wscale, bscale = lin(ks[4], ks[5], rnn_dim, z_dim)
    return dict(W1=W1, b1=b1, Wloc=Wloc, bloc=bloc, Wscale=Wscale, bscale=bscale)


def _reference(z_t_1, u_t_1, h_rnn, p):
    zu = jnp.concatenate([z_t_1, u_t_1], axis=1)
    h = 0.5 * (jnp.tanh(zu @ p["W1"] + p["b1"]) + h_rnn)
    return h @ p["Wloc"] + p["bloc"], h @ p["Wscale"] + p["bscale"]


if __name__ == "__main__":
    B, z_dim, u_dim, rnn_dim = 8, 8, 8, 32

    key = jax.random.PRNGKey(0)
    k_z, k_u, k_h, k_p = jax.random.split(key, 4)

    z_t_1 = jax.random.normal(k_z, (B, z_dim), jnp.float32)
    u_t_1 = jax.random.normal(k_u, (B, u_dim), jnp.float32)
    h_rnn = jax.random.normal(k_h, (B, rnn_dim), jnp.float32)

    params = init_combiner_params(k_p, z_dim, u_dim, rnn_dim)
    fused = fuse_combiner_params(params, z_dim, u_dim)   # one-time weight prep

    loc, scale = combiner_forward(z_t_1, u_t_1, h_rnn, fused)
    jax.block_until_ready((loc, scale))

    loc_ref, scale_ref = _reference(z_t_1, u_t_1, h_rnn, params)
    assert loc.shape == (B, z_dim) and scale.shape == (B, z_dim)
    assert jnp.allclose(loc, loc_ref, atol=1e-5), "loc mismatch"
    assert jnp.allclose(scale, scale_ref, atol=1e-5), "scale mismatch"

    print("KERNEL_OK")
</pallas_src>

<mosaic_0001>
module attributes {stable_mosaic.version = 11 : i64} {
  func.func @_combiner_kernel_zu(%arg0: i32, %arg1: memref<8x8xf32, #tpu.memory_space<vmem>>, %arg2: memref<8x8xf32, #tpu.memory_space<vmem>>, %arg3: memref<8x32xf32, #tpu.memory_space<vmem>>, %arg4: memref<8x32xf32, #tpu.memory_space<vmem>>, %arg5: memref<8x32xf32, #tpu.memory_space<vmem>>, %arg6: memref<1x32xf32, #tpu.memory_space<vmem>>, %arg7: memref<32x128xf32, #tpu.memory_space<vmem>>, %arg8: memref<1x128xf32, #tpu.memory_space<vmem>>, %arg9: memref<8x128xf32, #tpu.memory_space<vmem>>) attributes {dimension_semantics = [#tpu.dimension_semantics<parallel>], iteration_bounds = array<i64: 1>, scalar_prefetch = 0 : i64, scratch_operands = 0 : i64, tpu.core_type = #tpu.core_type<tc>, window_params = [{transform_indices = @transform_0, window_bounds = array<i64: 8, 8>}, {transform_indices = @transform_1, window_bounds = array<i64: 8, 8>}, {transform_indices = @transform_2, window_bounds = array<i64: 8, 32>}, {pipeline_mode = #tpu.pipeline_mode<synchronous>, transform_indices = @transform_3, window_bounds = array<i64: 8, 32>}, {pipeline_mode = #tpu.pipeline_mode<synchronous>, transform_indices = @transform_4, window_bounds = array<i64: 8, 32>}, {pipeline_mode = #tpu.pipeline_mode<synchronous>, transform_indices = @transform_5, window_bounds = array<i64: 1, 32>}, {pipeline_mode = #tpu.pipeline_mode<synchronous>, transform_indices = @transform_6, window_bounds = array<i64: 32, 128>}, {pipeline_mode = #tpu.pipeline_mode<synchronous>, transform_indices = @transform_7, window_bounds = array<i64: 1, 128>}, {transform_indices = @transform_8, window_bounds = array<i64: 8, 128>}]} {
    %c0 = arith.constant 0 : index
    %c0_0 = arith.constant 0 : index
    %0 = vector.load %arg1[%c0, %c0_0] : memref<8x8xf32, #tpu.memory_space<vmem>>, vector<8x8xf32>
    %c0_1 = arith.constant 0 : index
    %c0_2 = arith.constant 0 : index
    %1 = vector.load %arg4[%c0_1, %c0_2] : memref<8x32xf32, #tpu.memory_space<vmem>>, vector<8x32xf32>
    %cst = arith.constant dense<0.000000e+00> : vector<8x32xf32>
    %2 = tpu.matmul %0, %1, %cst {dimension_numbers = #tpu.dot_dimension_numbers<[1], [0], [0], [1], [0, 0, 1, 1], [], []>} : vector<8x8xf32>, vector<8x32xf32>, vector<8x32xf32> -> vector<8x32xf32>
    %c0_3 = arith.constant 0 : index
    %c0_4 = arith.constant 0 : index
    %3 = vector.load %arg2[%c0_3, %c0_4] : memref<8x8xf32, #tpu.memory_space<vmem>>, vector<8x8xf32>
    %c0_5 = arith.constant 0 : index
    %c0_6 = arith.constant 0 : index
    %4 = vector.load %arg5[%c0_5, %c0_6] : memref<8x32xf32, #tpu.memory_space<vmem>>, vector<8x32xf32>
    %cst_7 = arith.constant dense<0.000000e+00> : vector<8x32xf32>
    %5 = tpu.matmul %3, %4, %cst_7 {dimension_numbers = #tpu.dot_dimension_numbers<[1], [0], [0], [1], [0, 0, 1, 1], [], []>} : vector<8x8xf32>, vector<8x32xf32>, vector<8x32xf32> -> vector<8x32xf32>
    %6 = arith.addf %2, %5 : vector<8x32xf32>
    %c0_8 = arith.constant 0 : index
    %c0_9 = arith.constant 0 : index
    %7 = vector.load %arg6[%c0_8, %c0_9] : memref<1x32xf32, #tpu.memory_space<vmem>>, vector<1x32xf32>
    %8 = vector.broadcast %7 : vector<1x32xf32> to vector<8x32xf32>
    %9 = arith.addf %6, %8 : vector<8x32xf32>
    %10 = math.tanh %9 : vector<8x32xf32>
    %c0_10 = arith.constant 0 : index
    %c0_11 = arith.constant 0 : index
    %11 = vector.load %arg3[%c0_10, %c0_11] : memref<8x32xf32, #tpu.memory_space<vmem>>, vector<8x32xf32>
    %12 = arith.addf %10, %11 : vector<8x32xf32>
    %c0_12 = arith.constant 0 : index
    %c0_13 = arith.constant 0 : index
    %13 = vector.load %arg7[%c0_12, %c0_13] : memref<32x128xf32, #tpu.memory_space<vmem>>, vector<32x128xf32>
    %cst_14 = arith.constant dense<0.000000e+00> : vector<8x128xf32>
    %14 = tpu.matmul %12, %13, %cst_14 {dimension_numbers = #tpu.dot_dimension_numbers<[1], [0], [0], [1], [0, 0, 1, 1], [], []>} : vector<8x32xf32>, vector<32x128xf32>, vector<8x128xf32> -> vector<8x128xf32>
    %c0_15 = arith.constant 0 : index
    %c0_16 = arith.constant 0 : index
    %15 = vector.load %arg8[%c0_15, %c0_16] : memref<1x128xf32, #tpu.memory_space<vmem>>, vector<1x128xf32>
    %16 = vector.broadcast %15 : vector<1x128xf32> to vector<8x128xf32>
    %17 = arith.addf %14, %16 : vector<8x128xf32>
    %c0_17 = arith.constant 0 : index
    %c0_18 = arith.constant 0 : index
    %18 = vector.load %arg9[%c0_17, %c0_18] : memref<8x128xf32, #tpu.memory_space<vmem>>, vector<8x128xf32>
    tpu.vector_store %arg9[%c0_17, %c0_18], %17 {strides = array<i32>} : memref<8x128xf32, #tpu.memory_space<vmem>>, vector<8x128xf32>,
    return
  }
  func.func @transform_0(%arg0: i32) -> (i32, i32) {
    %c0_i32 = arith.constant 0 : i32
    %c0_i32_0 = arith.constant 0 : i32
    return %arg0, %c0_i32 : i32, i32
  }
  func.func @transform_1(%arg0: i32) -> (i32, i32) {
    %c0_i32 = arith.constant 0 : i32
    %c0_i32_0 = arith.constant 0 : i32
    return %arg0, %c0_i32 : i32, i32
  }
  func.func @transform_2(%arg0: i32) -> (i32, i32) {
    %c0_i32 = arith.constant 0 : i32
    %c0_i32_0 = arith.constant 0 : i32
    return %arg0, %c0_i32 : i32, i32
  }
  func.func @transform_3(%arg0: i32) -> (i32, i32) {
    %c0_i32 = arith.constant 0 : i32
    %c0_i32_0 = arith.constant 0 : i32
    %c0_i32_1 = arith.constant 0 : i32
    return %c0_i32, %c0_i32_0 : i32, i32
  }
  func.func @transform_4(%arg0: i32) -> (i32, i32) {
    %c0_i32 = arith.constant 0 : i32
    %c0_i32_0 = arith.constant 0 : i32
    %c0_i32_1 = arith.constant 0 : i32
    return %c0_i32, %c0_i32_0 : i32, i32
  }
  func.func @transform_5(%arg0: i32) -> (i32, i32) {
    %c0_i32 = arith.constant 0 : i32
    %c0_i32_0 = arith.constant 0 : i32
    %c0_i32_1 = arith.constant 0 : i32
    return %c0_i32, %c0_i32_0 : i32, i32
  }
  func.func @transform_6(%arg0: i32) -> (i32, i32) {
    %c0_i32 = arith.constant 0 : i32
    %c0_i32_0 = arith.constant 0 : i32
    %c0_i32_1 = arith.constant 0 : i32
    return %c0_i32, %c0_i32_0 : i32, i32
  }
  func.func @transform_7(%arg0: i32) -> (i32, i32) {
    %c0_i32 = arith.constant 0 : i32
    %c0_i32_0 = arith.constant 0 : i32
    %c0_i32_1 = arith.constant 0 : i32
    return %c0_i32, %c0_i32_0 : i32, i32
  }
  func.func @transform_8(%arg0: i32) -> (i32, i32) {
    %c0_i32 = arith.constant 0 : i32
    %c0_i32_0 = arith.constant 0 : i32
    return %arg0, %c0_i32 : i32, i32
  }
}

</mosaic_0001>

<llo_original>
// kernel: tpu_custom_call.1
$region0: #{tpu_custom_call.1}
  #allocation0 [shape = 'u32[]', space=smem, size = 0x4, offset = 0x4, fixed_abs, tag = 'smem constant byte address 0x4 - core index']
  #allocation1 [shape = 'u32[72,128]{1,0:T(1,128)}', space=vmem, size = 0x9000, scoped, tag = 'internal scratch']
  %s0 = inlined_call_operand.hbm [shape: f32[8,8], index: 0, kind: input, shape index: {}]
  %s1 = inlined_call_operand.hbm [shape: f32[8,8], index: 1, kind: input, shape index: {}]
  %s2 = inlined_call_operand.hbm [shape: f32[8,32], index: 2, kind: input, shape index: {}]
  %s3 = inlined_call_operand.hbm [shape: f32[8,32], index: 3, kind: input, shape index: {}]
  %s4 = inlined_call_operand.hbm [shape: f32[8,32], index: 4, kind: input, shape index: {}]
  %s5 = inlined_call_operand.vmem [shape: f32[1,32], index: 5, kind: input, shape index: {}]
  %s6 = inlined_call_operand.hbm [shape: f32[32,128], index: 6, kind: input, shape index: {}]
  %s7 = inlined_call_operand.vmem [shape: f32[1,128], index: 7, kind: input, shape index: {}]
  %s8 = inlined_call_operand.hbm [shape: f32[8,128], index: 8, kind: output, shape index: {}]
  %s9 = sld [smem:[#allocation0]]
  $region66: #{tpu_custom_call.1} parent=0
    _
  %s11 = ssub.s32 1, %s9
  %s12 = scalar_select 0, %s11, %s9
  $region1: #{tpu_custom_call.1} parent=0
    #allocation2 [shape = 'u8[4096]{0}', space=vmem, size = 0x1000, scoped, tag = 'input window, operand 0, single buffered']
    #allocation3 [shape = 's32[1]{0}', space=sflag, size = 0x4, scoped, tag = 'scoped memory for tpu_custom_call.1']
    #allocation4 [shape = 's32[1]{0}', space=sflag, size = 0x4, scoped, tag = 'scoped memory for tpu_custom_call.1']
    #allocation5 [shape = 'u8[4096]{0}', space=vmem, size = 0x1000, scoped, tag = 'input window, operand 1, single buffered']
    #allocation6 [shape = 's32[1]{0}', space=sflag, size = 0x4, scoped, tag = 'scoped memory for tpu_custom_call.1']
    #allocation7 [shape = 'u8[4096]{0}', space=vmem, size = 0x1000, scoped, tag = 'input window, operand 2, single buffered']
    #allocation8 [shape = 'u8[4096]{0}', space=vmem, size = 0x1000, scoped, tag = 'input window, operand 3, single buffered']
    #allocation9 [shape = 's32[1]{0}', space=sflag, size = 0x4, scoped, tag = 'scoped memory for tpu_custom_call.1']
    #allocation10 [shape = 'u8[4096]{0}', space=vmem, size = 0x1000, scoped, tag = 'input window, operand 4, single buffered']
    #allocation11 [shape = 'u8[16384]{0}', space=vmem, size = 0x4000, scoped, tag = 'input window, operand 6, single buffered']
    #allocation12 [shape = 's32[1]{0}', space=sflag, size = 0x4, scoped, tag = 'scoped memory for tpu_custom_call.1']
    #allocation13 [shape = 'u8[4096]{0}', space=vmem, size = 0x1000, scoped, tag = 'output window, operand 0, single buffered']
    %13 = vsyncpa [#allocation3], 0
    %14 = vsyncpa [#allocation6], 0
    %15 = vsyncpa [#allocation9], 0
    %16 = vsyncpa [#allocation12], 0
    %17 = vsyncpa [#allocation4], 0
    // Predicated region
    $region2: #{tpu_custom_call.1} parent=1 // pred_check
      _
    $region3: #{tpu_custom_call.1} parent=1 // pred_check_branch
      %19 = sbr.rel (0) target = $region5
    $region4: #{tpu_custom_call.1} parent=1 // pred_region
      %21 = vsyncadd [#allocation3], 0
      %s23 = sshll.u32 %s0, 4
      %s24 = int_to_ptr.hbm [resolvable:$true] %s23
      %s25 = sshll.u32 [#allocation2], 4
      %s26 = int_to_ptr.vmem [resolvable:$true] %s25
      %28 = dma.hbm_to_vmem [thread:$0]  %s24, 128, %s26, [#allocation3]
    $region5: #{tpu_custom_call.1} parent=1 // pred_fallthru
      _
    // Predicated region
    $region6: #{tpu_custom_call.1} parent=1 // pred_check
      _
    $region7: #{tpu_custom_call.1} parent=1 // pred_check_branch
      %30 = sbr.rel (0) target = $region9
    $region8: #{tpu_custom_call.1} parent=1 // pred_region
      %32 = vsyncadd [#allocation6], 0
      %s34 = sshll.u32 %s1, 4
      %s35 = int_to_ptr.hbm [resolvable:$true] %s34
      %s36 = sshll.u32 [#allocation5], 4
      %s37 = int_to_ptr.vmem [resolvable:$true] %s36
      %39 = dma.hbm_to_vmem [thread:$0]  %s35, 128, %s37, [#allocation6]
    $region9: #{tpu_custom_call.1} parent=1 // pred_fallthru
      _
    // Predicated region
    $region10: #{tpu_custom_call.1} parent=1 // pred_check
      _
    $region11: #{tpu_custom_call.1} parent=1 // pred_check_branch
      %41 = sbr.rel (0) target = $region13
    $region12: #{tpu_custom_call.1} parent=1 // pred_region
      %43 = vsyncadd [#allocation6], 0
      %s45 = sshll.u32 %s2, 4
      %s46 = int_to_ptr.hbm [resolvable:$true] %s45
      %s47 = sshll.u32 [#allocation7], 4
      %s48 = int_to_ptr.vmem [resolvable:$true] %s47
      %50 = dma.hbm_to_vmem [thread:$0]  %s46, 128, %s48, [#allocation6]
    $region13: #{tpu_custom_call.1} parent=1 // pred_fallthru
      _
    // Predicated region
    $region14: #{tpu_custom_call.1} parent=1 // pred_check
      _
    $region15: #{tpu_custom_call.1} parent=1 // pred_check_branch
      %52 = sbr.rel (0) target = $region17
    $region16: #{tpu_custom_call.1} parent=1 // pred_region
      %54 = vsyncadd [#allocation9], 0
      %s56 = sshll.u32 %s3, 4
      %s57 = int_to_ptr.hbm [resolvable:$true] %s56
      %s58 = sshll.u32 [#allocation8], 4
      %s59 = int_to_ptr.vmem [resolvable:$true] %s58
      %61 = dma.hbm_to_vmem [thread:$0]  %s57, 128, %s59, [#allocation9]
    $region17: #{tpu_custom_call.1} parent=1 // pred_fallthru
      _
    // Predicated region
    $region18: #{tpu_custom_call.1} parent=1 // pred_check
      _
    $region19: #{tpu_custom_call.1} parent=1 // pred_check_branch
      %63 = sbr.rel (0) target = $region21
    $region20: #{tpu_custom_call.1} parent=1 // pred_region
      %65 = vsyncadd [#allocation9], 0
      %s67 = sshll.u32 %s4, 4
      %s68 = int_to_ptr.hbm [resolvable:$true] %s67
      %s69 = sshll.u32 [#allocation10], 4
      %s70 = int_to_ptr.vmem [resolvable:$true] %s69
      %72 = dma.hbm_to_vmem [thread:$0]  %s68, 128, %s70, [#allocation9]
    $region21: #{tpu_custom_call.1} parent=1 // pred_fallthru
      _
    // Predicated region
    $region22: #{tpu_custom_call.1} parent=1 // pred_check
      _
    $region23: #{tpu_custom_call.1} parent=1 // pred_check_branch
      %74 = sbr.rel (0) target = $region25
    $region24: #{tpu_custom_call.1} parent=1 // pred_region
      _
    $region25: #{tpu_custom_call.1} parent=1 // pred_fallthru
      _
    // Predicated region
    $region26: #{tpu_custom_call.1} parent=1 // pred_check
      _
    $region27: #{tpu_custom_call.1} parent=1 // pred_check_branch
      %76 = sbr.rel (0) target = $region29
    $region28: #{tpu_custom_call.1} parent=1 // pred_region
      %78 = vsyncadd [#allocation12], 0
      %s79 = sshll.u32 %s6, 4
      %s80 = int_to_ptr.hbm [resolvable:$true] %s79
      %s81 = sshll.u32 [#allocation11], 4
      %s82 = int_to_ptr.vmem [resolvable:$true] %s81
      %87 = dma.hbm_to_vmem [thread:$0]  %s80, 512, %s82, [#allocation12], 128, 128, 8
    $region29: #{tpu_custom_call.1} parent=1 // pred_fallthru
      _
    // Predicated region
    $region30: #{tpu_custom_call.1} parent=1 // pred_check
      _
    $region31: #{tpu_custom_call.1} parent=1 // pred_check_branch
      %89 = sbr.rel (0) target = $region33
    $region32: #{tpu_custom_call.1} parent=1 // pred_region
      _
    $region33: #{tpu_custom_call.1} parent=1 // pred_fallthru
      _
    // Predicated region
    $region34: #{tpu_custom_call.1} parent=1 // pred_check
      _
    $region35: #{tpu_custom_call.1} parent=1 // pred_check_branch
      %91 = sbr.rel (0) target = $region37
    $region36: #{tpu_custom_call.1} parent=1 // pred_region
      %93 = dma.done [#allocation3], 128
    $region37: #{tpu_custom_call.1} parent=1 // pred_fallthru
      _
    // Predicated region
    $region38: #{tpu_custom_call.1} parent=1 // pred_check
      _
    $region39: #{tpu_custom_call.1} parent=1 // pred_check_branch
      %95 = sbr.rel (0) target = $region41
    $region40: #{tpu_custom_call.1} parent=1 // pred_region
      %97 = dma.done [#allocation6], 128
    $region41: #{tpu_custom_call.1} parent=1 // pred_fallthru
      _
    // Predicated region
    $region42: #{tpu_custom_call.1} parent=1 // pred_check
      _
    $region43: #{tpu_custom_call.1} parent=1 // pred_check_branch
      %99 = sbr.rel (0) target = $region45
    $region44: #{tpu_custom_call.1} parent=1 // pred_region
      %101 = dma.done [#allocation6], 128
    $region45: #{tpu_custom_call.1} parent=1 // pred_fallthru
      _
    // Predicated region
    $region46: #{tpu_custom_call.1} parent=1 // pred_check
      _
    $region47: #{tpu_custom_call.1} parent=1 // pred_check_branch
      %103 = sbr.rel (0) target = $region49
    $region48: #{tpu_custom_call.1} parent=1 // pred_region
      %105 = dma.done [#allocation9], 128
    $region49: #{tpu_custom_call.1} parent=1 // pred_fallthru
      _
    // Predicated region
    $region50: #{tpu_custom_call.1} parent=1 // pred_check
      _
    $region51: #{tpu_custom_call.1} parent=1 // pred_check_branch
      %107 = sbr.rel (0) target = $region53
    $region52: #{tpu_custom_call.1} parent=1 // pred_region
      %109 = dma.done [#allocation9], 128
    $region53: #{tpu_custom_call.1} parent=1 // pred_fallthru
      _
    // Predicated region
    $region54: #{tpu_custom_call.1} parent=1 // pred_check
      _
    $region55: #{tpu_custom_call.1} parent=1 // pred_check_branch
      %111 = sbr.rel (0) target = $region57
    $region56: #{tpu_custom_call.1} parent=1 // pred_region
      %113 = dma.done [#allocation12], 512
    $region57: #{tpu_custom_call.1} parent=1 // pred_fallthru
      _
    %v114 = vld [vmem:[#allocation2] sm:$0xff]
    %v115 = vld [vmem:[#allocation8] sm:$0xff]
    %v116 = vld [vmem:[#allocation5] sm:$0xff]
    %v117 = vld [vmem:[#allocation10] sm:$0xff]
    %vm118 = vcmask 64512
    %v120 = vsel %vm118, %v116, 0
    %122 = vmatpush.msra.mxu0 0.0
    %123 = vmatpush.msra.mxu0 0.0
    %124 = vmatpush.msra.mxu0 0.0
    %125 = vmatpush.msra.mxu0 0.0
    %126 = vmatpush.msra.mxu0 0.0
    %127 = vmatpush.msra.mxu0 0.0
    %128 = vmatpush.msra.mxu0 0.0
    %129 = vmatpush.msra.mxu0 0.0
    %130 = vmatpush.msra.mxu0 0.0
    %131 = vmatpush.msra.mxu0 0.0
    %132 = vmatpush.msra.mxu0 0.0
    %133 = vmatpush.msra.mxu0 0.0
    %134 = vmatpush.msra.mxu0 0.0
    %135 = vmatpush.msra.mxu0 0.0
    %136 = vmatpush.msra.mxu0 0.0
    %137 = vmatpush.msra.mxu0 %v117
    %138 = vmatmul.f32.gmra.mxu0 %v120
    %v139 = vpop.f32.mrf.mxu0
    %v140 = vadd.f32 0.0, %v139
    %141 = vdwg.mxu0
    %v143 = vsel %vm118, %v114, 0
    %145 = vmatpush.msra.mxu0 0.0
    %146 = vmatpush.msra.mxu0 0.0
    %147 = vmatpush.msra.mxu0 0.0
    %148 = vmatpush.msra.mxu0 0.0
    %149 = vmatpush.msra.mxu0 0.0
    %150 = vmatpush.msra.mxu0 0.0
    %151 = vmatpush.msra.mxu0 0.0
    %152 = vmatpush.msra.mxu0 0.0
    %153 = vmatpush.msra.mxu0 0.0
    %154 = vmatpush.msra.mxu0 0.0
    %155 = vmatpush.msra.mxu0 0.0
    %156 = vmatpush.msra.mxu0 0.0
    %157 = vmatpush.msra.mxu0 0.0
    %158 = vmatpush.msra.mxu0 0.0
    %159 = vmatpush.msra.mxu0 0.0
    %160 = vmatpush.msra.mxu0 %v115
    %161 = vmatmul.f32.gmra.mxu0 %v143
    %v162 = vpop.f32.mrf.mxu0
    %v163 = vadd.f32 %v140, %v162
    %164 = vdwg.mxu0
    %v165 = vld [vmem:[%s5] sm:$0x1]
    %v167 = vperm.slane %v165, 0
    %v169 = vadd.f32 %v163, %v167
    %v170 = vtanh.pop %v169
    %v171 = vld [vmem:[#allocation7] sm:$0xff]
    %v172 = vadd.f32 %v170, %v171
    %v173 = vld [vmem:[#allocation11] sm:$0xff]
    %v174 = vld [vmem:[#allocation11 + $0x8] sm:$0xff]
    %v175 = vld [vmem:[#allocation11 + $0x10] sm:$0xff]
    %v176 = vld [vmem:[#allocation11 + $0x18] sm:$0xff]
    %v177 = vld [vmem:[%s7] sm:$0x1]
    %v179 = vperm.slane %v177, 0
    %vm181 = vcmask 261120
    %v183 = vsel %vm181, %v172, 0
    %185 = vmatpush.msra.mxu0 0.0
    %186 = vmatpush.msra.mxu0 0.0
    %187 = vmatpush.msra.mxu0 0.0
    %188 = vmatpush.msra.mxu0 0.0
    %189 = vmatpush.msra.mxu0 0.0
    %190 = vmatpush.msra.mxu0 0.0
    %191 = vmatpush.msra.mxu0 0.0
    %192 = vmatpush.msra.mxu0 0.0
    %193 = vmatpush.msra.mxu0 0.0
    %194 = vmatpush.msra.mxu0 0.0
    %195 = vmatpush.msra.mxu0 0.0
    %196 = vmatpush.msra.mxu0 0.0
    %197 = vmatpush.msra.mxu0 %v176
    %198 = vmatpush.msra.mxu0 %v175
    %199 = vmatpush.msra.mxu0 %v174
    %200 = vmatpush.msra.mxu0 %v173
    %201 = vmatmul.f32.gmra.mxu0 %v183
    %v202 = vpop.f32.mrf.mxu0
    %v203 = vadd.f32 %v179, %v202
    %204 = vdwg.mxu0
    %205 = vst [vmem:[#allocation13] sm:$0xff] %v203
    // Predicated region
    $region58: #{tpu_custom_call.1} parent=1 // pred_check
      _
    $region59: #{tpu_custom_call.1} parent=1 // pred_check_branch
      %207 = sbr.rel (0) target = $region61
    $region60: #{tpu_custom_call.1} parent=1 // pred_region
      %209 = vsyncadd [#allocation4], 0
      %s211 = sshll.u32 [#allocation13], 4
      %s212 = int_to_ptr.vmem [resolvable:$true] %s211
      %s213 = sshll.u32 %s8, 4
      %s214 = int_to_ptr.hbm [resolvable:$true] %s213
      %216 = dma.vmem_to_hbm [thread:$0]  %s212, 128, %s214, [#allocation4]
    $region61: #{tpu_custom_call.1} parent=1 // pred_fallthru
      _
    // Predicated region
    $region62: #{tpu_custom_call.1} parent=1 // pred_check
      _
    $region63: #{tpu_custom_call.1} parent=1 // pred_check_branch
      %218 = sbr.rel (0) target = $region65
    $region64: #{tpu_custom_call.1} parent=1 // pred_region
      %220 = dma.done [#allocation4], 128
    $region65: #{tpu_custom_call.1} parent=1 // pred_fallthru
      _
    %221 = vsyncpa [#allocation3], 1
    %222 = vsyncpa [#allocation6], 1
    %223 = vsyncpa [#allocation9], 1
    %224 = vsyncpa [#allocation12], 1
    %225 = vsyncpa [#allocation4], 1

</llo_original>
